<compile_context>
chip_gen: v7x
topology: tpu7x:2x2x1
jax: 0.10.0
libtpu: 0.0.40
codegen_flags: <defaults>
</compile_context>

<pallas_src>
import math

import jax
import jax.numpy as jnp
from jax.experimental import pallas as pl
from jax.experimental.pallas import tpu as pltpu

# ---- model config (small, BERT-like) ----
HIDDEN = 32
NUM_HEADS = 4
HEAD_DIM = HIDDEN // NUM_HEADS
INTERMEDIATE = 64
LN_EPS = 1e-12


def _layernorm(x, gamma, beta):
    # One-pass variance: E[x^2] - mean^2 (halves the cross-lane reductions).
    mean = jnp.mean(x, axis=-1, keepdims=True)
    mean_sq = jnp.mean(x * x, axis=-1, keepdims=True)
    var = jnp.maximum(mean_sq - mean * mean, 0.0)
    return (x - mean) * jax.lax.rsqrt(var + LN_EPS) * gamma + beta


def _gelu_exact(x):
    # HF BERT "gelu" is the erf-based (exact) GELU.
    return 0.5 * x * (1.0 + jax.lax.erf(x * (1.0 / math.sqrt(2.0))))


def _head_pool_matrices(h, nh, scale):
    # hp[f, j]  = scale if f // HEAD_DIM == j else 0   (scores pooling, scale folded in)
    # hpt[j, f] = 1.0   if f // HEAD_DIM == j else 0   (probs -> hidden expansion)
    f_i = jax.lax.broadcasted_iota(jnp.int32, (h, nh), 0)
    lo = jax.lax.broadcasted_iota(jnp.int32, (h, nh), 1) * HEAD_DIM
    hp = jnp.where((f_i >= lo) & (f_i < lo + HEAD_DIM), scale, 0.0)
    lo_t = jax.lax.broadcasted_iota(jnp.int32, (nh, h), 0) * HEAD_DIM
    f_j = jax.lax.broadcasted_iota(jnp.int32, (nh, h), 1)
    hpt = jnp.where((f_j >= lo_t) & (f_j < lo_t + HEAD_DIM), 1.0, 0.0)
    return hp, hpt


def bert_interaction_head_kernel(
    feat_ref, mask_ref,
    wqkv_ref, wo_ref, wi_ref, wo2_ref, wp_ref,
    rows_ref,
    out_ref,
):
    x = feat_ref[...]                                   # [TB, S, H] bf16
    tb, s, h = x.shape
    nh = NUM_HEADS
    scale = 1.0 / math.sqrt(HEAD_DIM)

    # --- stacked per-row parameters (single DMA), sliced in-register ---
    rows = rows_ref[...]                                # [16, 128] f32
    b_qkv = rows[0:1, : 3 * h]
    b_o = rows[1:2, :h]
    ln1_g = rows[2:3, :h]
    ln1_b = rows[3:4, :h]
    b_i = rows[4:5, :INTERMEDIATE]
    b_o2 = rows[5:6, :h]
    ln2_g = rows[6:7, :h]
    ln2_b = rows[7:8, :h]
    b_p = rows[8:9, :h]
    w_m = rows[9:10, :h]                                # matcher weight row [1, H]
    b_m = rows[10:11, 0:1]                              # matcher bias       [1, 1]

    # --- fused Q/K/V projection over every token (bf16 operands, f32 acc) ---
    x_flat = x.reshape(tb * s, h)
    qkv = jnp.dot(x_flat, wqkv_ref[...],
                  preferred_element_type=jnp.float32) + b_qkv        # [TB*S, 3H] f32
    k = qkv[:, h:2 * h]                                 # [TB*S, H]
    v = qkv[:, 2 * h:3 * h]                             # [TB*S, H]

    # --- CLS-only query path (the matcher only consumes token 0's output row) ---
    cls = x[:, 0, :].astype(jnp.float32)                # [TB, H]
    q = qkv.reshape(tb, s, 3 * h)[:, 0, :h]             # [TB, H]

    # --- per-head attention scores via constant head-pooling matmul ---
    hp, hpt = _head_pool_matrices(h, nh, scale)
    q_rows = jnp.broadcast_to(q[:, None, :], (tb, s, h)).reshape(tb * s, h)
    scores_flat = jnp.dot(q_rows * k, hp,
                          preferred_element_type=jnp.float32)        # [TB*S, NH]
    mask = jnp.transpose(mask_ref[...])[:, :, None]     # [TB, S, 1] (XLU transpose)
    scores = scores_flat.reshape(tb, s, nh) + mask      # broadcast over heads

    # --- softmax over the key axis (axis=1), per example & head ---
    m = jnp.max(scores, axis=1, keepdims=True)
    e = jnp.exp(scores - m)
    denom = jnp.sum(e, axis=1, keepdims=True)
    probs = e * pl.reciprocal(denom, approx=True)       # [TB, S, NH]
    # dropout / head_mask are identity in eval mode

    # --- context[b, f] = sum_s probs[b, s, head(f)] * v[b, s, f] ---
    probs_full = jnp.dot(probs.reshape(tb * s, nh), hpt,
                         preferred_element_type=jnp.float32)         # [TB*S, H]
    ctx = jnp.sum((probs_full * v).reshape(tb, s, h), axis=1)        # [TB, H]

    # --- BertSelfOutput (CLS row only): dense + residual + LayerNorm ---
    attn = jnp.dot(ctx.astype(jnp.bfloat16), wo_ref[...],
                   preferred_element_type=jnp.float32) + b_o
    attn_out = _layernorm(attn + cls, ln1_g, ln1_b)

    # --- BertIntermediate (erf GELU) + BertOutput (CLS row only) ---
    inter = _gelu_exact(
        jnp.dot(attn_out.astype(jnp.bfloat16), wi_ref[...],
                preferred_element_type=jnp.float32) + b_i)
    layer = jnp.dot(inter.astype(jnp.bfloat16), wo2_ref[...],
                    preferred_element_type=jnp.float32) + b_o2
    layer = _layernorm(layer + attn_out, ln2_g, ln2_b)

    # --- BertPooler (dense + tanh) + matcher Linear(H, 1) ---
    pooled = jnp.tanh(jnp.dot(layer.astype(jnp.bfloat16), wp_ref[...],
                              preferred_element_type=jnp.float32) + b_p)
    score = jnp.einsum("oh,bh->ob", w_m, pooled,
                       preferred_element_type=jnp.float32) + b_m     # [1, TB]
    out_ref[0] = score                                  # lane-dense [1, TB] store


def bert_interaction_head(features, additive_mask, params, *, block_batch=256):
    """features: [B, S, H]; additive_mask: [B, S] (0 / -10000-style additive)."""
    B, S, H = features.shape
    assert H == HIDDEN

    if B >= block_batch:
        tb = max(128, (block_batch // 128) * 128)       # keep TB a multiple of 128
        if B < 2 * tb:                                  # >= 2 grid steps for v7x's 2 TCs
            tb = 128 * pl.cdiv(pl.cdiv(B, 2), 128)
    else:
        tb = B                                          # tiny batch: one exact block
    num_blocks = pl.cdiv(B, tb)                         # partial tail handled by Pallas

    # bf16 streaming operands; accumulation stays f32 inside the kernel.
    feats = features.astype(jnp.bfloat16)
    # Lane-dense mask transport: [S, B] (lane = batch) -> one contiguous DMA per block.
    mask_sb = jnp.transpose(additive_mask.astype(jnp.float32))       # [S, B]

    # Fused QKV weight (Q folded in).
    wqkv = jnp.concatenate([params["wq"], params["wk"], params["wv"]],
                           axis=1).astype(jnp.bfloat16)              # [H, 3H]
    bqkv = jnp.concatenate([params["bq"], params["bk"], params["bv"]], axis=1)

    # Stack all tiny per-row parameters into one [16, 128] f32 operand.
    def _row(vec):
        vec = jnp.asarray(vec, jnp.float32).reshape(1, -1)
        return jnp.pad(vec, ((0, 0), (0, 128 - vec.shape[1])))

    rows = jnp.concatenate([
        _row(bqkv), _row(params["bo"]),
        _row(params["ln1_g"]), _row(params["ln1_b"]),
        _row(params["bi"]), _row(params["bo2"]),
        _row(params["ln2_g"]), _row(params["ln2_b"]),
        _row(params["bp"]),
        _row(params["wm"].reshape(1, HIDDEN)),
        _row(params["bm"].reshape(1, 1)),
    ], axis=0)
    rows = jnp.pad(rows, ((0, 16 - rows.shape[0]), (0, 0)))          # [16, 128]

    weights = [
        wqkv,
        params["wo"].astype(jnp.bfloat16),
        params["wi"].astype(jnp.bfloat16),
        params["wo2"].astype(jnp.bfloat16),
        params["wp"].astype(jnp.bfloat16),
    ]

    def _full(arr):
        n = arr.ndim
        return pl.BlockSpec(arr.shape, lambda b, _n=n: (0,) * _n)

    in_specs = [
        # TODO(synk): if the feature DMA shows up exposed in a trace at large TB,
        # add pipeline_mode=pl.Buffered(3) to this BlockSpec.
        pl.BlockSpec((tb, S, H), lambda b: (b, 0, 0)),   # features (TB examples / step)
        pl.BlockSpec((S, tb), lambda b: (0, b)),         # additive mask, lane = batch
    ] + [_full(w) for w in weights] + [_full(rows)]

    out = pl.pallas_call(
        bert_interaction_head_kernel,
        out_shape=jax.ShapeDtypeStruct((num_blocks, 1, tb), jnp.float32),
        grid=(num_blocks,),
        in_specs=in_specs,
        out_specs=pl.BlockSpec((1, 1, tb), lambda b: (b, 0, 0)),
        compiler_params=pltpu.CompilerParams(
            dimension_semantics=("parallel",),
            vmem_limit_bytes=32 * 1024 * 1024),          # headroom over v5e's 16 MiB default
    )(feats, mask_sb, *weights, rows)

    return out.reshape(num_blocks * tb)[:B]              # matches torch .squeeze() on [B, 1]


def init_params(key):
    def dense(k, fan_in, fan_out):
        kw, kb = jax.random.split(k)
        w = jax.random.normal(kw, (fan_in, fan_out), jnp.float32) * 0.02
        b = jax.random.normal(kb, (1, fan_out), jnp.float32) * 0.02
        return w, b

    ks = jax.random.split(key, 8)
    wq, bq = dense(ks[0], HIDDEN, HIDDEN)
    wk, bk = dense(ks[1], HIDDEN, HIDDEN)
    wv, bv = dense(ks[2], HIDDEN, HIDDEN)
    wo, bo = dense(ks[3], HIDDEN, HIDDEN)
    wi, bi = dense(ks[4], HIDDEN, INTERMEDIATE)
    wo2, bo2 = dense(ks[5], INTERMEDIATE, HIDDEN)
    wp, bp = dense(ks[6], HIDDEN, HIDDEN)
    wm, bm = dense(ks[7], HIDDEN, 1)
    return {
        "wq": wq, "bq": bq, "wk": wk, "bk": bk, "wv": wv, "bv": bv,
        "wo": wo, "bo": bo,
        "ln1_g": jnp.ones((1, HIDDEN), jnp.float32),
        "ln1_b": jnp.zeros((1, HIDDEN), jnp.float32),
        "wi": wi, "bi": bi, "wo2": wo2, "bo2": bo2,
        "ln2_g": jnp.ones((1, HIDDEN), jnp.float32),
        "ln2_b": jnp.zeros((1, HIDDEN), jnp.float32),
        "wp": wp, "bp": bp, "wm": wm, "bm": bm,
    }


if __name__ == "__main__":
    B, S = 2, 8
    key = jax.random.PRNGKey(0)
    k_feat, k_params = jax.random.split(key)

    features = jax.random.normal(k_feat, (B, S, HIDDEN), jnp.float32)
    # binary mask: batch 0 fully attended, batch 1 has last 2 tokens padded
    binary = jnp.array([[1] * S, [1] * (S - 2) + [0, 0]], jnp.float32)
    additive_mask = (1.0 - binary) * -10000.0

    params = init_params(k_params)

    cls = bert_interaction_head(features, additive_mask, params)
    jax.block_until_ready(cls)
    assert cls.shape == (B,)
    print("KERNEL_OK")
</pallas_src>

<mosaic_0001>
module attributes {stable_mosaic.version = 11 : i64} {
  func.func @bert_interaction_head_kernel(%arg0: i32, %arg1: memref<2x8x32xbf16, #tpu.memory_space<vmem>>, %arg2: memref<8x2xf32, #tpu.memory_space<vmem>>, %arg3: memref<32x96xbf16, #tpu.memory_space<vmem>>, %arg4: memref<32x32xbf16, #tpu.memory_space<vmem>>, %arg5: memref<32x64xbf16, #tpu.memory_space<vmem>>, %arg6: memref<64x32xbf16, #tpu.memory_space<vmem>>, %arg7: memref<32x32xbf16, #tpu.memory_space<vmem>>, %arg8: memref<16x128xf32, #tpu.memory_space<vmem>>, %arg9: memref<1x1x2xf32, #tpu.memory_space<vmem>>) attributes {dimension_semantics = [#tpu.dimension_semantics<parallel>], iteration_bounds = array<i64: 1>, scalar_prefetch = 0 : i64, scratch_operands = 0 : i64, tpu.core_type = #tpu.core_type<tc>, window_params = [{transform_indices = @transform_0, window_bounds = array<i64: 2, 8, 32>}, {transform_indices = @transform_1, window_bounds = array<i64: 8, 2>}, {pipeline_mode = #tpu.pipeline_mode<synchronous>, transform_indices = @transform_2, window_bounds = array<i64: 32, 96>}, {pipeline_mode = #tpu.pipeline_mode<synchronous>, transform_indices = @transform_3, window_bounds = array<i64: 32, 32>}, {pipeline_mode = #tpu.pipeline_mode<synchronous>, transform_indices = @transform_4, window_bounds = array<i64: 32, 64>}, {pipeline_mode = #tpu.pipeline_mode<synchronous>, transform_indices = @transform_5, window_bounds = array<i64: 64, 32>}, {pipeline_mode = #tpu.pipeline_mode<synchronous>, transform_indices = @transform_6, window_bounds = array<i64: 32, 32>}, {pipeline_mode = #tpu.pipeline_mode<synchronous>, transform_indices = @transform_7, window_bounds = array<i64: 16, 128>}, {transform_indices = @transform_8, window_bounds = array<i64: 1, 1, 2>}]} {
    %c0 = arith.constant 0 : index
    %c0_0 = arith.constant 0 : index
    %c0_1 = arith.constant 0 : index
    %0 = vector.load %arg1[%c0, %c0_0, %c0_1] : memref<2x8x32xbf16, #tpu.memory_space<vmem>>, vector<2x8x32xbf16>
    %c0_2 = arith.constant 0 : index
    %c0_3 = arith.constant 0 : index
    %1 = vector.load %arg8[%c0_2, %c0_3] : memref<16x128xf32, #tpu.memory_space<vmem>>, vector<16x128xf32>
    %2 = vector.extract_strided_slice %1 {offsets = [0, 0], sizes = [1, 96], strides = [1, 1]} : vector<16x128xf32> to vector<1x96xf32>
    %3 = vector.extract_strided_slice %1 {offsets = [1, 0], sizes = [1, 32], strides = [1, 1]} : vector<16x128xf32> to vector<1x32xf32>
    %4 = vector.extract_strided_slice %1 {offsets = [2, 0], sizes = [1, 32], strides = [1, 1]} : vector<16x128xf32> to vector<1x32xf32>
    %5 = vector.extract_strided_slice %1 {offsets = [3, 0], sizes = [1, 32], strides = [1, 1]} : vector<16x128xf32> to vector<1x32xf32>
    %6 = vector.extract_strided_slice %1 {offsets = [4, 0], sizes = [1, 64], strides = [1, 1]} : vector<16x128xf32> to vector<1x64xf32>
    %7 = vector.extract_strided_slice %1 {offsets = [5, 0], sizes = [1, 32], strides = [1, 1]} : vector<16x128xf32> to vector<1x32xf32>
    %8 = vector.extract_strided_slice %1 {offsets = [6, 0], sizes = [1, 32], strides = [1, 1]} : vector<16x128xf32> to vector<1x32xf32>
    %9 = vector.extract_strided_slice %1 {offsets = [7, 0], sizes = [1, 32], strides = [1, 1]} : vector<16x128xf32> to vector<1x32xf32>
    %10 = vector.extract_strided_slice %1 {offsets = [8, 0], sizes = [1, 32], strides = [1, 1]} : vector<16x128xf32> to vector<1x32xf32>
    %11 = vector.extract_strided_slice %1 {offsets = [9, 0], sizes = [1, 32], strides = [1, 1]} : vector<16x128xf32> to vector<1x32xf32>
    %12 = vector.extract_strided_slice %1 {offsets = [10, 0], sizes = [1, 1], strides = [1, 1]} : vector<16x128xf32> to vector<1x1xf32>
    %13 = vector.shape_cast %0 : vector<2x8x32xbf16> to vector<16x32xbf16>
    %c0_4 = arith.constant 0 : index
    %c0_5 = arith.constant 0 : index
    %14 = vector.load %arg3[%c0_4, %c0_5] : memref<32x96xbf16, #tpu.memory_space<vmem>>, vector<32x96xbf16>
    %cst = arith.constant dense<0.000000e+00> : vector<16x96xf32>
    %15 = tpu.matmul %13, %14, %cst {dimension_numbers = #tpu.dot_dimension_numbers<[1], [0], [0], [1], [0, 0, 1, 1], [], []>} : vector<16x32xbf16>, vector<32x96xbf16>, vector<16x96xf32> -> vector<16x96xf32>
    %16 = vector.broadcast %2 : vector<1x96xf32> to vector<16x96xf32>
    %17 = arith.addf %15, %16 : vector<16x96xf32>
    %18 = vector.extract_strided_slice %17 {offsets = [0, 32], sizes = [16, 32], strides = [1, 1]} : vector<16x96xf32> to vector<16x32xf32>
    %19 = vector.extract_strided_slice %17 {offsets = [0, 64], sizes = [16, 32], strides = [1, 1]} : vector<16x96xf32> to vector<16x32xf32>
    %20 = vector.extract_strided_slice %0 {offsets = [0, 0, 0], sizes = [2, 1, 32], strides = [1, 1, 1]} : vector<2x8x32xbf16> to vector<2x1x32xbf16>
    %21 = vector.shape_cast %20 : vector<2x1x32xbf16> to vector<2x32xbf16>
    %22 = arith.extf %21 : vector<2x32xbf16> to vector<2x32xf32>
    %23 = vector.shape_cast %17 : vector<16x96xf32> to vector<2x8x96xf32>
    %24 = vector.extract_strided_slice %23 {offsets = [0, 0, 0], sizes = [2, 1, 32], strides = [1, 1, 1]} : vector<2x8x96xf32> to vector<2x1x32xf32>
    %25 = vector.shape_cast %24 : vector<2x1x32xf32> to vector<2x32xf32>
    %26 = tpu.iota {dimensions = array<i32: 0>} : vector<32x4xi32>
    %27 = tpu.iota {dimensions = array<i32: 1>} : vector<32x4xi32>
    %c8_i32 = arith.constant 8 : i32
    %28 = vector.broadcast %c8_i32 : i32 to vector<32x4xi32>
    %29 = arith.muli %27, %28 : vector<32x4xi32>
    %30 = arith.cmpi sge, %26, %29 : vector<32x4xi32>
    %c8_i32_6 = arith.constant 8 : i32
    %31 = vector.broadcast %c8_i32_6 : i32 to vector<32x4xi32>
    %32 = arith.addi %29, %31 : vector<32x4xi32>
    %33 = arith.cmpi slt, %26, %32 : vector<32x4xi32>
    %34 = arith.andi %30, %33 : vector<32x4xi1>
    %cst_7 = arith.constant 0.353553385 : f32
    %cst_8 = arith.constant 0.000000e+00 : f32
    %35 = vector.broadcast %cst_7 : f32 to vector<32x4xf32>
    %36 = vector.broadcast %cst_8 : f32 to vector<32x4xf32>
    %37 = arith.select %34, %35, %36 : vector<32x4xi1>, vector<32x4xf32>
    %38 = tpu.iota {dimensions = array<i32: 0>} : vector<4x32xi32>
    %c8_i32_9 = arith.constant 8 : i32
    %39 = vector.broadcast %c8_i32_9 : i32 to vector<4x32xi32>
    %40 = arith.muli %38, %39 : vector<4x32xi32>
    %41 = tpu.iota {dimensions = array<i32: 1>} : vector<4x32xi32>
    %42 = arith.cmpi sge, %41, %40 : vector<4x32xi32>
    %c8_i32_10 = arith.constant 8 : i32
    %43 = vector.broadcast %c8_i32_10 : i32 to vector<4x32xi32>
    %44 = arith.addi %40, %43 : vector<4x32xi32>
    %45 = arith.cmpi slt, %41, %44 : vector<4x32xi32>
    %46 = arith.andi %42, %45 : vector<4x32xi1>
    %cst_11 = arith.constant 1.000000e+00 : f32
    %cst_12 = arith.constant 0.000000e+00 : f32
    %47 = vector.broadcast %cst_11 : f32 to vector<4x32xf32>
    %48 = vector.broadcast %cst_12 : f32 to vector<4x32xf32>
    %49 = arith.select %46, %47, %48 : vector<4x32xi1>, vector<4x32xf32>
    %50 = vector.shape_cast %25 : vector<2x32xf32> to vector<2x1x32xf32>
    %51 = vector.shape_cast %50 : vector<2x1x32xf32> to vector<2x1x32xf32>
    %52 = vector.broadcast %51 : vector<2x1x32xf32> to vector<2x8x32xf32>
    %53 = vector.shape_cast %52 : vector<2x8x32xf32> to vector<16x32xf32>
    %54 = arith.mulf %53, %18 : vector<16x32xf32>
    %cst_13 = arith.constant dense<0.000000e+00> : vector<16x4xf32>
    %55 = tpu.matmul %54, %37, %cst_13 {dimension_numbers = #tpu.dot_dimension_numbers<[1], [0], [0], [1], [0, 0, 1, 1], [], []>} : vector<16x32xf32>, vector<32x4xf32>, vector<16x4xf32> -> vector<16x4xf32>
    %c0_14 = arith.constant 0 : index
    %c0_15 = arith.constant 0 : index
    %56 = vector.load %arg2[%c0_14, %c0_15] : memref<8x2xf32, #tpu.memory_space<vmem>>, vector<8x2xf32>
    %57 = tpu.transpose %56, [1, 0] : vector<8x2xf32> -> vector<2x8xf32>
    %58 = vector.shape_cast %57 : vector<2x8xf32> to vector<2x8x1xf32>
    %59 = vector.shape_cast %55 : vector<16x4xf32> to vector<2x8x4xf32>
    %60 = vector.broadcast %58 : vector<2x8x1xf32> to vector<2x8x4xf32>
    %61 = arith.addf %59, %60 : vector<2x8x4xf32>
    %cst_16 = arith.constant dense<0xFF800000> : vector<2x4xf32>
    %62 = vector.multi_reduction <maximumf>, %61, %cst_16 [1] : vector<2x8x4xf32> to vector<2x4xf32>
    %63 = vector.shape_cast %62 : vector<2x4xf32> to vector<2x1x4xf32>
    %64 = vector.broadcast %63 : vector<2x1x4xf32> to vector<2x8x4xf32>
    %65 = arith.subf %61, %64 : vector<2x8x4xf32>
    %66 = math.exp %65 : vector<2x8x4xf32>
    %cst_17 = arith.constant dense<0.000000e+00> : vector<2x4xf32>
    %67 = vector.multi_reduction <add>, %66, %cst_17 [1] : vector<2x8x4xf32> to vector<2x4xf32>
    %68 = vector.shape_cast %67 : vector<2x4xf32> to vector<2x1x4xf32>
    %69 = tpu.reciprocal %68 {approx = true} : vector<2x1x4xf32> -> vector<2x1x4xf32>
    %70 = vector.broadcast %69 : vector<2x1x4xf32> to vector<2x8x4xf32>
    %71 = arith.mulf %66, %70 : vector<2x8x4xf32>
    %72 = vector.shape_cast %71 : vector<2x8x4xf32> to vector<16x4xf32>
    %cst_18 = arith.constant dense<0.000000e+00> : vector<16x32xf32>
    %73 = tpu.matmul %72, %49, %cst_18 {dimension_numbers = #tpu.dot_dimension_numbers<[1], [0], [0], [1], [0, 0, 1, 1], [], []>} : vector<16x4xf32>, vector<4x32xf32>, vector<16x32xf32> -> vector<16x32xf32>
    %74 = arith.mulf %73, %19 : vector<16x32xf32>
    %75 = vector.shape_cast %74 : vector<16x32xf32> to vector<2x8x32xf32>
    %cst_19 = arith.constant dense<0.000000e+00> : vector<2x32xf32>
    %76 = vector.multi_reduction <add>, %75, %cst_19 [1] : vector<2x8x32xf32> to vector<2x32xf32>
    %77 = arith.truncf %76 : vector<2x32xf32> to vector<2x32xbf16>
    %c0_20 = arith.constant 0 : index
    %c0_21 = arith.constant 0 : index
    %78 = vector.load %arg4[%c0_20, %c0_21] : memref<32x32xbf16, #tpu.memory_space<vmem>>, vector<32x32xbf16>
    %cst_22 = arith.constant dense<0.000000e+00> : vector<2x32xf32>
    %79 = tpu.matmul %77, %78, %cst_22 {dimension_numbers = #tpu.dot_dimension_numbers<[1], [0], [0], [1], [0, 0, 1, 1], [], []>} : vector<2x32xbf16>, vector<32x32xbf16>, vector<2x32xf32> -> vector<2x32xf32>
    %80 = vector.broadcast %3 : vector<1x32xf32> to vector<2x32xf32>
    %81 = arith.addf %79, %80 : vector<2x32xf32>
    %82 = arith.addf %81, %22 : vector<2x32xf32>
    %cst_23 = arith.constant dense<0.000000e+00> : vector<2xf32>
    %83 = vector.multi_reduction <add>, %82, %cst_23 [1] : vector<2x32xf32> to vector<2xf32>
    %84 = vector.shape_cast %83 : vector<2xf32> to vector<2x1xf32>
    %cst_24 = arith.constant 3.200000e+01 : f32
    %85 = vector.broadcast %cst_24 : f32 to vector<2x1xf32>
    %86 = arith.divf %84, %85 : vector<2x1xf32>
    %87 = arith.mulf %82, %82 : vector<2x32xf32>
    %cst_25 = arith.constant dense<0.000000e+00> : vector<2xf32>
    %88 = vector.multi_reduction <add>, %87, %cst_25 [1] : vector<2x32xf32> to vector<2xf32>
    %89 = vector.shape_cast %88 : vector<2xf32> to vector<2x1xf32>
    %cst_26 = arith.constant 3.200000e+01 : f32
    %90 = vector.broadcast %cst_26 : f32 to vector<2x1xf32>
    %91 = arith.divf %89, %90 : vector<2x1xf32>
    %92 = arith.mulf %86, %86 : vector<2x1xf32>
    %93 = arith.subf %91, %92 : vector<2x1xf32>
    %cst_27 = arith.constant 0.000000e+00 : f32
    %94 = vector.broadcast %cst_27 : f32 to vector<2x1xf32>
    %95 = arith.maximumf %93, %94 : vector<2x1xf32>
    %96 = vector.broadcast %86 : vector<2x1xf32> to vector<2x32xf32>
    %97 = arith.subf %82, %96 : vector<2x32xf32>
    %cst_28 = arith.constant 9.99999996E-13 : f32
    %98 = vector.broadcast %cst_28 : f32 to vector<2x1xf32>
    %99 = arith.addf %95, %98 : vector<2x1xf32>
    %100 = math.rsqrt %99 : vector<2x1xf32>
    %101 = vector.broadcast %100 : vector<2x1xf32> to vector<2x32xf32>
    %102 = arith.mulf %97, %101 : vector<2x32xf32>
    %103 = vector.broadcast %4 : vector<1x32xf32> to vector<2x32xf32>
    %104 = arith.mulf %102, %103 : vector<2x32xf32>
    %105 = vector.broadcast %5 : vector<1x32xf32> to vector<2x32xf32>
    %106 = arith.addf %104, %105 : vector<2x32xf32>
    %107 = arith.truncf %106 : vector<2x32xf32> to vector<2x32xbf16>
    %c0_29 = arith.constant 0 : index
    %c0_30 = arith.constant 0 : index
    %108 = vector.load %arg5[%c0_29, %c0_30] : memref<32x64xbf16, #tpu.memory_space<vmem>>, vector<32x64xbf16>
    %cst_31 = arith.constant dense<0.000000e+00> : vector<2x64xf32>
    %109 = tpu.matmul %107, %108, %cst_31 {dimension_numbers = #tpu.dot_dimension_numbers<[1], [0], [0], [1], [0, 0, 1, 1], [], []>} : vector<2x32xbf16>, vector<32x64xbf16>, vector<2x64xf32> -> vector<2x64xf32>
    %110 = vector.broadcast %6 : vector<1x64xf32> to vector<2x64xf32>
    %111 = arith.addf %109, %110 : vector<2x64xf32>
    %cst_32 = arith.constant 5.000000e-01 : f32
    %112 = vector.broadcast %cst_32 : f32 to vector<2x64xf32>
    %113 = arith.mulf %112, %111 : vector<2x64xf32>
    %cst_33 = arith.constant 0.707106769 : f32
    %114 = vector.broadcast %cst_33 : f32 to vector<2x64xf32>
    %115 = arith.mulf %111, %114 : vector<2x64xf32>
    %116 = math.erf %115 : vector<2x64xf32>
    %cst_34 = arith.constant 1.000000e+00 : f32
    %117 = vector.broadcast %cst_34 : f32 to vector<2x64xf32>
    %118 = arith.addf %117, %116 : vector<2x64xf32>
    %119 = arith.mulf %113, %118 : vector<2x64xf32>
    %120 = arith.truncf %119 : vector<2x64xf32> to vector<2x64xbf16>
    %c0_35 = arith.constant 0 : index
    %c0_36 = arith.constant 0 : index
    %121 = vector.load %arg6[%c0_35, %c0_36] : memref<64x32xbf16, #tpu.memory_space<vmem>>, vector<64x32xbf16>
    %cst_37 = arith.constant dense<0.000000e+00> : vector<2x32xf32>
    %122 = tpu.matmul %120, %121, %cst_37 {dimension_numbers = #tpu.dot_dimension_numbers<[1], [0], [0], [1], [0, 0, 1, 1], [], []>} : vector<2x64xbf16>, vector<64x32xbf16>, vector<2x32xf32> -> vector<2x32xf32>
    %123 = vector.broadcast %7 : vector<1x32xf32> to vector<2x32xf32>
    %124 = arith.addf %122, %123 : vector<2x32xf32>
    %125 = arith.addf %124, %106 : vector<2x32xf32>
    %cst_38 = arith.constant dense<0.000000e+00> : vector<2xf32>
    %126 = vector.multi_reduction <add>, %125, %cst_38 [1] : vector<2x32xf32> to vector<2xf32>
    %127 = vector.shape_cast %126 : vector<2xf32> to vector<2x1xf32>
    %cst_39 = arith.constant 3.200000e+01 : f32
    %128 = vector.broadcast %cst_39 : f32 to vector<2x1xf32>
    %129 = arith.divf %127, %128 : vector<2x1xf32>
    %130 = arith.mulf %125, %125 : vector<2x32xf32>
    %cst_40 = arith.constant dense<0.000000e+00> : vector<2xf32>
    %131 = vector.multi_reduction <add>, %130, %cst_40 [1] : vector<2x32xf32> to vector<2xf32>
    %132 = vector.shape_cast %131 : vector<2xf32> to vector<2x1xf32>
    %cst_41 = arith.constant 3.200000e+01 : f32
    %133 = vector.broadcast %cst_41 : f32 to vector<2x1xf32>
    %134 = arith.divf %132, %133 : vector<2x1xf32>
    %135 = arith.mulf %129, %129 : vector<2x1xf32>
    %136 = arith.subf %134, %135 : vector<2x1xf32>
    %cst_42 = arith.constant 0.000000e+00 : f32
    %137 = vector.broadcast %cst_42 : f32 to vector<2x1xf32>
    %138 = arith.maximumf %136, %137 : vector<2x1xf32>
    %139 = vector.broadcast %129 : vector<2x1xf32> to vector<2x32xf32>
    %140 = arith.subf %125, %139 : vector<2x32xf32>
    %cst_43 = arith.constant 9.99999996E-13 : f32
    %141 = vector.broadcast %cst_43 : f32 to vector<2x1xf32>
    %142 = arith.addf %138, %141 : vector<2x1xf32>
    %143 = math.rsqrt %142 : vector<2x1xf32>
    %144 = vector.broadcast %143 : vector<2x1xf32> to vector<2x32xf32>
    %145 = arith.mulf %140, %144 : vector<2x32xf32>
    %146 = vector.broadcast %8 : vector<1x32xf32> to vector<2x32xf32>
    %147 = arith.mulf %145, %146 : vector<2x32xf32>
    %148 = vector.broadcast %9 : vector<1x32xf32> to vector<2x32xf32>
    %149 = arith.addf %147, %148 : vector<2x32xf32>
    %150 = arith.truncf %149 : vector<2x32xf32> to vector<2x32xbf16>
    %c0_44 = arith.constant 0 : index
    %c0_45 = arith.constant 0 : index
    %151 = vector.load %arg7[%c0_44, %c0_45] : memref<32x32xbf16, #tpu.memory_space<vmem>>, vector<32x32xbf16>
    %cst_46 = arith.constant dense<0.000000e+00> : vector<2x32xf32>
    %152 = tpu.matmul %150, %151, %cst_46 {dimension_numbers = #tpu.dot_dimension_numbers<[1], [0], [0], [1], [0, 0, 1, 1], [], []>} : vector<2x32xbf16>, vector<32x32xbf16>, vector<2x32xf32> -> vector<2x32xf32>
    %153 = vector.broadcast %10 : vector<1x32xf32> to vector<2x32xf32>
    %154 = arith.addf %152, %153 : vector<2x32xf32>
    %155 = math.tanh %154 : vector<2x32xf32>
    "tpu.trace_start"() <{level = 10 : i32, message = "oh,bh->ob"}> : () -> ()
    %cst_47 = arith.constant dense<0.000000e+00> : vector<1x2xf32>
    %156 = tpu.matmul %11, %155, %cst_47 {dimension_numbers = #tpu.dot_dimension_numbers<[1], [1], [0], [0], [0, 0, 1, 0], [], []>} : vector<1x32xf32>, vector<2x32xf32>, vector<1x2xf32> -> vector<1x2xf32>
    "tpu.trace_stop"() : () -> ()
    %157 = vector.broadcast %12 : vector<1x1xf32> to vector<1x2xf32>
    %158 = arith.addf %156, %157 : vector<1x2xf32>
    %c0_48 = arith.constant 0 : index
    %c0_49 = arith.constant 0 : index
    %c0_50 = arith.constant 0 : index
    %159 = vector.load %arg9[%c0_48, %c0_49, %c0_50] : memref<1x1x2xf32, #tpu.memory_space<vmem>>, vector<1x1x2xf32>
    %160 = vector.shape_cast %159 : vector<1x1x2xf32> to vector<1x2xf32>
    %161 = vector.shape_cast %158 : vector<1x2xf32> to vector<1x1x2xf32>
    tpu.vector_store %arg9[%c0_48, %c0_49, %c0_50], %161 {strides = array<i32>} : memref<1x1x2xf32, #tpu.memory_space<vmem>>, vector<1x1x2xf32>,
    return
  }
  func.func @transform_0(%arg0: i32) -> (i32, i32, i32) {
    %c0_i32 = arith.constant 0 : i32
    %c0_i32_0 = arith.constant 0 : i32
    %c0_i32_1 = arith.constant 0 : i32
    return %arg0, %c0_i32, %c0_i32_0 : i32, i32, i32
  }
  func.func @transform_1(%arg0: i32) -> (i32, i32) {
    %c0_i32 = arith.constant 0 : i32
    %c0_i32_0 = arith.constant 0 : i32
    return %c0_i32, %arg0 : i32, i32
  }
  func.func @transform_2(%arg0: i32) -> (i32, i32) {
    %c0_i32 = arith.constant 0 : i32
    %c0_i32_0 = arith.constant 0 : i32
    %c0_i32_1 = arith.constant 0 : i32
    return %c0_i32, %c0_i32_0 : i32, i32
  }
  func.func @transform_3(%arg0: i32) -> (i32, i32) {
    %c0_i32 = arith.constant 0 : i32
    %c0_i32_0 = arith.constant 0 : i32
    %c0_i32_1 = arith.constant 0 : i32
    return %c0_i32, %c0_i32_0 : i32, i32
  }
  func.func @transform_4(%arg0: i32) -> (i32, i32) {
    %c0_i32 = arith.constant 0 : i32
    %c0_i32_0 = arith.constant 0 : i32
    %c0_i32_1 = arith.constant 0 : i32
    return %c0_i32, %c0_i32_0 : i32, i32
  }
  func.func @transform_5(%arg0: i32) -> (i32, i32) {
    %c0_i32 = arith.constant 0 : i32
    %c0_i32_0 = arith.constant 0 : i32
    %c0_i32_1 = arith.constant 0 : i32
    return %c0_i32, %c0_i32_0 : i32, i32
  }
  func.func @transform_6(%arg0: i32) -> (i32, i32) {
    %c0_i32 = arith.constant 0 : i32
    %c0_i32_0 = arith.constant 0 : i32
    %c0_i32_1 = arith.constant 0 : i32
    return %c0_i32, %c0_i32_0 : i32, i32
  }
  func.func @transform_7(%arg0: i32) -> (i32, i32) {
    %c0_i32 = arith.constant 0 : i32
    %c0_i32_0 = arith.constant 0 : i32
    %c0_i32_1 = arith.constant 0 : i32
    return %c0_i32, %c0_i32_0 : i32, i32
  }
  func.func @transform_8(%arg0: i32) -> (i32, i32, i32) {
    %c0_i32 = arith.constant 0 : i32
    %c0_i32_0 = arith.constant 0 : i32
    %c0_i32_1 = arith.constant 0 : i32
    return %arg0, %c0_i32, %c0_i32_0 : i32, i32, i32
  }
}

</mosaic_0001>

<llo_original>
// kernel: tpu_custom_call.1
$region0: #{tpu_custom_call.1}
  #allocation0 [shape = 'u32[]', space=smem, size = 0x4, offset = 0x4, fixed_abs, tag = 'smem constant byte address 0x4 - core index']
  #allocation1 [shape = 'u32[144,128]{1,0:T(1,128)}', space=vmem, size = 0x12000, scoped, tag = 'internal scratch']
  %s0 = inlined_call_operand.hbm [shape: bf16[2,8,32], index: 0, kind: input, shape index: {}]
  %s1 = inlined_call_operand.vmem [shape: f32[8,2], index: 1, kind: input, shape index: {}]
  %s2 = inlined_call_operand.vmem [shape: bf16[32,96], index: 2, kind: input, shape index: {}]
  %s3 = inlined_call_operand.vmem [shape: bf16[32,32], index: 3, kind: input, shape index: {}]
  %s4 = inlined_call_operand.vmem [shape: bf16[32,64], index: 4, kind: input, shape index: {}]
  %s5 = inlined_call_operand.vmem [shape: bf16[64,32], index: 5, kind: input, shape index: {}]
  %s6 = inlined_call_operand.vmem [shape: bf16[32,32], index: 6, kind: input, shape index: {}]
  %s7 = inlined_call_operand.hbm [shape: f32[16,128], index: 7, kind: input, shape index: {}]
  %s8 = inlined_call_operand.hbm [shape: f32[1,1,2], index: 8, kind: output, shape index: {}]
  %s9 = sld [smem:[#allocation0]]
  $region50: #{tpu_custom_call.1} parent=0
    _
  %s11 = ssub.s32 1, %s9
  %s12 = scalar_select 0, %s11, %s9
  $region1: #{tpu_custom_call.1} parent=0
    #allocation2 [shape = 'u8[4096]{0}', space=vmem, size = 0x1000, scoped, tag = 'input window, operand 0, single buffered']
    #allocation3 [shape = 's32[1]{0}', space=sflag, size = 0x4, scoped, tag = 'scoped memory for tpu_custom_call.1']
    #allocation4 [shape = 's32[1]{0}', space=sflag, size = 0x4, scoped, tag = 'scoped memory for tpu_custom_call.1']
    #allocation5 [shape = 'u8[8192]{0}', space=vmem, size = 0x2000, scoped, tag = 'input window, operand 7, single buffered']
    #allocation6 [shape = 's32[1]{0}', space=sflag, size = 0x4, scoped, tag = 'scoped memory for tpu_custom_call.1']
    #allocation7 [shape = 'u8[512]{0}', space=vmem, size = 0x400, scoped, tag = 'output window, operand 0, single buffered']
    %13 = vsyncpa [#allocation3], 0
    %14 = vsyncpa [#allocation6], 0
    %15 = vsyncpa [#allocation4], 0
    // Predicated region
    $region2: #{tpu_custom_call.1} parent=1 // pred_check
      _
    $region3: #{tpu_custom_call.1} parent=1 // pred_check_branch
      %17 = sbr.rel (0) target = $region5
    $region4: #{tpu_custom_call.1} parent=1 // pred_region
      %s19 = ssub.s32 128, 128
      %20 = vsyncadd [#allocation3], %s19
      %s21 = sshll.u32 [#allocation2], 4
      %s22 = int_to_ptr.vmem [resolvable:$true] %s21
      %27 = dma.hbm_to_vmem [thread:$0]  %s0, 128, %s22, [#allocation3], 64, 64, 4
    $region5: #{tpu_custom_call.1} parent=1 // pred_fallthru
      _
    // Predicated region
    $region6: #{tpu_custom_call.1} parent=1 // pred_check
      _
    $region7: #{tpu_custom_call.1} parent=1 // pred_check_branch
      %29 = sbr.rel (0) target = $region9
    $region8: #{tpu_custom_call.1} parent=1 // pred_region
      _
    $region9: #{tpu_custom_call.1} parent=1 // pred_fallthru
      _
    // Predicated region
    $region10: #{tpu_custom_call.1} parent=1 // pred_check
      _
    $region11: #{tpu_custom_call.1} parent=1 // pred_check_branch
      %31 = sbr.rel (0) target = $region13
    $region12: #{tpu_custom_call.1} parent=1 // pred_region
      _
    $region13: #{tpu_custom_call.1} parent=1 // pred_fallthru
      _
    // Predicated region
    $region14: #{tpu_custom_call.1} parent=1 // pred_check
      _
    $region15: #{tpu_custom_call.1} parent=1 // pred_check_branch
      %33 = sbr.rel (0) target = $region17
    $region16: #{tpu_custom_call.1} parent=1 // pred_region
      _
    $region17: #{tpu_custom_call.1} parent=1 // pred_fallthru
      _
    // Predicated region
    $region18: #{tpu_custom_call.1} parent=1 // pred_check
      _
    $region19: #{tpu_custom_call.1} parent=1 // pred_check_branch
      %35 = sbr.rel (0) target = $region21
    $region20: #{tpu_custom_call.1} parent=1 // pred_region
      _
    $region21: #{tpu_custom_call.1} parent=1 // pred_fallthru
      _
    // Predicated region
    $region22: #{tpu_custom_call.1} parent=1 // pred_check
      _
    $region23: #{tpu_custom_call.1} parent=1 // pred_check_branch
      %37 = sbr.rel (0) target = $region25
    $region24: #{tpu_custom_call.1} parent=1 // pred_region
      _
    $region25: #{tpu_custom_call.1} parent=1 // pred_fallthru
      _
    // Predicated region
    $region26: #{tpu_custom_call.1} parent=1 // pred_check
      _
    $region27: #{tpu_custom_call.1} parent=1 // pred_check_branch
      %39 = sbr.rel (0) target = $region29
    $region28: #{tpu_custom_call.1} parent=1 // pred_region
      _
    $region29: #{tpu_custom_call.1} parent=1 // pred_fallthru
      _
    // Predicated region
    $region30: #{tpu_custom_call.1} parent=1 // pred_check
      _
    $region31: #{tpu_custom_call.1} parent=1 // pred_check_branch
      %41 = sbr.rel (0) target = $region33
    $region32: #{tpu_custom_call.1} parent=1 // pred_region
      %s43 = ssub.s32 256, 256
      %44 = vsyncadd [#allocation6], %s43
      %s45 = sshll.u32 [#allocation5], 4
      %s46 = int_to_ptr.vmem [resolvable:$true] %s45
      %51 = dma.hbm_to_vmem [thread:$0]  %s7, 256, %s46, [#allocation6], 128, 128, 8
    $region33: #{tpu_custom_call.1} parent=1 // pred_fallthru
      _
    // Predicated region
    $region34: #{tpu_custom_call.1} parent=1 // pred_check
      _
    $region35: #{tpu_custom_call.1} parent=1 // pred_check_branch
      %53 = sbr.rel (0) target = $region37
    $region36: #{tpu_custom_call.1} parent=1 // pred_region
      %54 = dma.done [#allocation3], 128
    $region37: #{tpu_custom_call.1} parent=1 // pred_fallthru
      _
    // Predicated region
    $region38: #{tpu_custom_call.1} parent=1 // pred_check
      _
    $region39: #{tpu_custom_call.1} parent=1 // pred_check_branch
      %56 = sbr.rel (0) target = $region41
    $region40: #{tpu_custom_call.1} parent=1 // pred_region
      %57 = dma.done [#allocation6], 256
    $region41: #{tpu_custom_call.1} parent=1 // pred_fallthru
      _
    %v59 = vld [vmem:[#allocation2] sm:$0xf]
    %v60 = vld [vmem:[#allocation2 + $0x4] sm:$0xf]
    %v61 = vld [vmem:[#allocation5] sm:$0xff]
    %v62 = vld [vmem:[#allocation5 + $0x8] sm:$0xff]
    %v63 = vld [vmem:[%s2] sm:$0xf]
    %v64 = vld [vmem:[%s2 + $0x4] sm:$0xf]
    %v65 = vld [vmem:[%s2 + $0x8] sm:$0xf]
    %v66 = vld [vmem:[%s2 + $0xc] sm:$0xf]
    %v67 = vlaneseq
    %v68 = vshrl.u32 %v67, 7
    %v69 = vsub.s32 0, %v68
    %v70 = vrot.slane %v61, %v69
    %v73 = vunpack.c.l.b16 %v59
    %v74 = vunpack.c.l.b16 %v60
    %v75 = vpack.c.b16 %v74, %v73
    %v80 = vunpack.c.l.b16 %v63
    %v81 = vunpack.c.l.b16 %v64
    %v82 = vunpack.c.l.b16 %v65
    %v83 = vunpack.c.l.b16 %v66
    %v84 = vpack.c.b16 %v81, %v80
    %v85 = vpack.c.b16 %v83, %v82
    %vm88 = vcmask 261120
    %v90 = vsel %vm88, %v75, 0
    %92 = vmatprep.subr.bf16.mxu0 0
    %93 = vmatpush1.bf16.msra.mxu0 %v84
    %94 = vmatprep.subr.bf16.mxu0 0
    %95 = vmatpush1.bf16.msra.mxu0 %v85
    %96 = vmatprep.subr.bf16.mxu0 0
    %97 = vmatpush1.bf16.msra.mxu0 0
    %98 = vmatprep.subr.bf16.mxu0 0
    %99 = vmatpush1.bf16.msra.mxu0 0
    %100 = vmatprep.subr.bf16.mxu0 0
    %101 = vmatpush1.bf16.msra.mxu0 0
    %102 = vmatprep.subr.bf16.mxu0 0
    %103 = vmatpush1.bf16.msra.mxu0 0
    %104 = vmatprep.subr.bf16.mxu0 0
    %105 = vmatpush1.bf16.msra.mxu0 0
    %106 = vmatprep.subr.bf16.mxu0 0
    %107 = vmatpush1.bf16.msra.mxu0 0
    %108 = vmatprep.subr.bf16.mxu0 0
    %109 = vmatpush1.bf16.msra.mxu0 0
    %110 = vmatprep.subr.bf16.mxu0 0
    %111 = vmatpush1.bf16.msra.mxu0 0
    %112 = vmatprep.subr.bf16.mxu0 0
    %113 = vmatpush1.bf16.msra.mxu0 0
    %114 = vmatprep.subr.bf16.mxu0 0
    %115 = vmatpush1.bf16.msra.mxu0 0
    %116 = vmatprep.subr.bf16.mxu0 0
    %117 = vmatpush1.bf16.msra.mxu0 0
    %118 = vmatprep.subr.bf16.mxu0 0
    %119 = vmatpush1.bf16.msra.mxu0 0
    %120 = vmatprep.subr.bf16.mxu0 0
    %121 = vmatpush1.bf16.msra.mxu0 0
    %122 = vmatprep.subr.bf16.mxu0 0
    %123 = vmatpush1.bf16.msra.mxu0 0
    %124 = vmatprep.mubr.bf16.mxu0 0
    %125 = vmatmul.mubr.bf16.gmra.mrb[0].mxu0 %v90
    %v126 = vpop.f32.mrb[0].mxu0
    %v127 = vadd.f32 %v70, %v126
    %v128 = vpop.f32.mrb[0].mxu0
    %v129 = vpop.f32.mrb[0].mxu0
    %v130 = vadd.f32 %v70, %v129
    %v131 = vpop.f32.mrb[0].mxu0
    %132 = vdwg.mxu0
    %v133 = vunpack.c.l.bf16 %v59
    %v134 = vunpack.c.l.bf16 %v60
    %v135 = vlaneseq
    %v136 = vshrl.u32 %v135, 7
    %v137 = vadd.s32 %v136, 8
    %v138 = vadd.s32 %v136, 16
    %v139 = vadd.s32 %v136, 24
    %v140 = vlaneseq
    %v141 = vand.u32 %v140, 127
    %v142 = vmul.u32 %v141, 8
    %vm143 = vcmp.ge.s32.totalorder %v136, %v142
    %vm144 = vcmp.ge.s32.totalorder %v137, %v142
    %vm145 = vcmp.ge.s32.totalorder %v138, %v142
    %vm146 = vcmp.ge.s32.totalorder %v139, %v142
    %v147 = vadd.s32 %v142, 8
    %vm148 = vcmp.lt.s32.totalorder %v136, %v147
    %vm149 = vcmp.lt.s32.totalorder %v137, %v147
    %vm150 = vcmp.lt.s32.totalorder %v138, %v147
    %vm151 = vcmp.lt.s32.totalorder %v139, %v147
    %vm152 = vmand %vm143, %vm148
    %vm153 = vmand %vm144, %vm149
    %vm154 = vmand %vm145, %vm150
    %vm155 = vmand %vm146, %vm151
    %v156 = vsel %vm152, 0.35355338, 0.0
    %v157 = vsel %vm153, 0.35355338, 0.0
    %v158 = vsel %vm154, 0.35355338, 0.0
    %v159 = vsel %vm155, 0.35355338, 0.0
    %v160 = vmul.u32 %v136, 8
    %vm161 = vcmp.ge.s32.totalorder %v141, %v160
    %v162 = vadd.s32 %v160, 8
    %vm163 = vcmp.lt.s32.totalorder %v141, %v162
    %vm164 = vmand %vm161, %vm163
    %v165 = vsel %vm164, 1.0, 0.0
    %v166 = vlaneseq
    %v167 = vshrl.u32 %v166, 7
    %v168 = vsub.s32 0, %v167
    %v169 = vrot.slane %v127, %v168
    %v170 = vlaneseq
    %v171 = vshrl.u32 %v170, 7
    %v172 = vsub.s32 0, %v171
    %v173 = vrot.slane %v130, %v172
    %176 = vrot.lane.b32.xlu0 %v127, 96
    %v177 = vpop.permute.xlu0 %176
    %178 = vrot.lane.b32.xlu0 %v130, 96
    %v179 = vpop.permute.xlu0 %178
    %v182 = vmul.f32 %v169, %v177
    %v183 = vmul.f32 %v173, %v179
    %v185 = vsel %vm88, %v182, 0
    %v188 = vsel %vm88, %v183, 0
    %190 = vmatprep.subr.mxu0 0.0
    %191 = vmatpush1.msra.mxu0 %v156
    %192 = vmatprep.subr.mxu0 0.0
    %193 = vmatpush1.msra.mxu0 %v157
    %194 = vmatprep.subr.mxu0 0.0
    %195 = vmatpush1.msra.mxu0 %v158
    %196 = vmatprep.subr.mxu0 0.0
    %197 = vmatpush1.msra.mxu0 %v159
    %198 = vmatprep.subr.mxu0 0.0
    %199 = vmatpush1.msra.mxu0 0.0
    %200 = vmatprep.subr.mxu0 0.0
    %201 = vmatpush1.msra.mxu0 0.0
    %202 = vmatprep.subr.mxu0 0.0
    %203 = vmatpush1.msra.mxu0 0.0
    %204 = vmatprep.subr.mxu0 0.0
    %205 = vmatpush1.msra.mxu0 0.0
    %206 = vmatprep.subr.mxu0 0.0
    %207 = vmatpush1.msra.mxu0 0.0
    %208 = vmatprep.subr.mxu0 0.0
    %209 = vmatpush1.msra.mxu0 0.0
    %210 = vmatprep.subr.mxu0 0.0
    %211 = vmatpush1.msra.mxu0 0.0
    %212 = vmatprep.subr.mxu0 0.0
    %213 = vmatpush1.msra.mxu0 0.0
    %214 = vmatprep.subr.mxu0 0.0
    %215 = vmatpush1.msra.mxu0 0.0
    %216 = vmatprep.subr.mxu0 0.0
    %217 = vmatpush1.msra.mxu0 0.0
    %218 = vmatprep.subr.mxu0 0.0
    %219 = vmatpush1.msra.mxu0 0.0
    %220 = vmatprep.subr.mxu0 0.0
    %221 = vmatpush1.msra.mxu0 0.0
    %222 = vmatprep.subr.mxu0 0.0
    %223 = vmatpush1.msra.mxu0 0.0
    %224 = vmatprep.subr.mxu0 0.0
    %225 = vmatpush1.msra.mxu0 0.0
    %226 = vmatprep.subr.mxu0 0.0
    %227 = vmatpush1.msra.mxu0 0.0
    %228 = vmatprep.subr.mxu0 0.0
    %229 = vmatpush1.msra.mxu0 0.0
    %230 = vmatprep.subr.mxu0 0.0
    %231 = vmatpush1.msra.mxu0 0.0
    %232 = vmatprep.subr.mxu0 0.0
    %233 = vmatpush1.msra.mxu0 0.0
    %234 = vmatprep.subr.mxu0 0.0
    %235 = vmatpush1.msra.mxu0 0.0
    %236 = vmatprep.subr.mxu0 0.0
    %237 = vmatpush1.msra.mxu0 0.0
    %238 = vmatprep.subr.mxu0 0.0
    %239 = vmatpush1.msra.mxu0 0.0
    %240 = vmatprep.subr.mxu0 0.0
    %241 = vmatpush1.msra.mxu0 0.0
    %242 = vmatprep.subr.mxu0 0.0
    %243 = vmatpush1.msra.mxu0 0.0
    %244 = vmatprep.subr.mxu0 0.0
    %245 = vmatpush1.msra.mxu0 0.0
    %246 = vmatprep.subr.mxu0 0.0
    %247 = vmatpush1.msra.mxu0 0.0
    %248 = vmatprep.subr.mxu0 0.0
    %249 = vmatpush1.msra.mxu0 0.0
    %250 = vmatprep.subr.mxu0 0.0
    %251 = vmatpush1.msra.mxu0 0.0
    %252 = vmatprep.subr.mxu0 0.0
    %253 = vmatpush1.msra.mxu0 0.0
    %254 = vmatprep.mubr.f32.mxu0 0.0
    %255 = vmatmul.mubr.f32.gmra.mrb[0].mxu0 %v185
    %v256 = vpop.f32.mrb[0].mxu0
    %v257 = vadd.f32 0.0, %v256
    %v258 = vpop.f32.mrb[0].mxu0
    %259 = vmatprep.mubr.f32.mxu0 0.0
    %260 = vmatmul.mubr.f32.gmra.mrb[0].mxu0 %v188
    %v261 = vpop.f32.mrb[0].mxu0
    %v262 = vadd.f32 0.0, %v261
    %v263 = vpop.f32.mrb[0].mxu0
    %264 = vdwg.mxu0
    %v265 = vld [vmem:[%s1] sm:$0xff]
    %266 = vxpose.xlu0.b32.start [1/16] %v265, 128
    %267 = vxpose.xlu0.b32.cont [2/16] 0.0, 128
    %268 = vxpose.xlu0.b32.cont [3/16] 0.0, 128
    %269 = vxpose.xlu0.b32.cont [4/16] 0.0, 128
    %270 = vxpose.xlu0.b32.cont [5/16] 0.0, 128
    %271 = vxpose.xlu0.b32.cont [6/16] 0.0, 128
    %272 = vxpose.xlu0.b32.cont [7/16] 0.0, 128
    %273 = vxpose.xlu0.b32.cont [8/16] 0.0, 128
    %274 = vxpose.xlu0.b32.cont [9/16] 0.0, 128
    %275 = vxpose.xlu0.b32.cont [10/16] 0.0, 128
    %276 = vxpose.xlu0.b32.cont [11/16] 0.0, 128
    %277 = vxpose.xlu0.b32.cont [12/16] 0.0, 128
    %278 = vxpose.xlu0.b32.cont [13/16] 0.0, 128
    %279 = vxpose.xlu0.b32.cont [14/16] 0.0, 128
    %280 = vxpose.xlu0.b32.cont [15/16] 0.0, 128
    %281 = vxpose.xlu0.b32.end [16/16] 0.0, 128
    %v282 = vpop.trf.xlu0
    %v283 = vpop.trf.xlu0
    %v284 = vpop.trf.xlu0
    %v285 = vpop.trf.xlu0
    %v286 = vpop.trf.xlu0
    %v287 = vpop.trf.xlu0
    %v288 = vpop.trf.xlu0
    %v289 = vpop.trf.xlu0
    %v290 = vpop.trf.xlu0
    %v291 = vpop.trf.xlu0
    %v292 = vpop.trf.xlu0
    %v293 = vpop.trf.xlu0
    %v294 = vpop.trf.xlu0
    %v295 = vpop.trf.xlu0
    %v296 = vpop.trf.xlu0
    %v297 = vpop.trf.xlu0
    %v298 = vlaneseq
    %v299 = vshrl.u32 %v298, 7
    %v300 = vsub.s32 0, %v299
    %v301 = vrot.slane %v282, %v300
    %303 = vbcast.lane.b32.xlu0 %v301, 256
    %v304 = vpop.permute.xlu0 %303
    %v305 = vlaneseq
    %v306 = vshrl.u32 %v305, 7
    %v307 = vsub.s32 1, %v306
    %v308 = vrot.slane %v282, %v307
    %310 = vbcast.lane.b32.xlu0 %v308, 256
    %v311 = vpop.permute.xlu0 %310
    %v312 = vadd.f32 %v257, %v304
    %v313 = vadd.f32 %v262, %v311
    %vm314 = vcmask 31744
    %v315 = vsel %vm314, %v312, -inf
    %v316 = vrot.slane %v315, 4
    %v317 = vmax.f32 %v315, %v316
    %v318 = vrot.slane %v317, 2
    %v319 = vmax.f32 %v317, %v318
    %v320 = vrot.slane %v319, 1
    %v321 = vmax.f32 %v319, %v320
    %v322 = vsel %vm314, %v313, -inf
    %v323 = vrot.slane %v322, 4
    %v324 = vmax.f32 %v322, %v323
    %v325 = vrot.slane %v324, 2
    %v326 = vmax.f32 %v324, %v325
    %v327 = vrot.slane %v326, 1
    %v328 = vmax.f32 %v326, %v327
    %v329 = vsub.f32 %v312, %v321
    %v330 = vsub.f32 %v313, %v328
    %v331 = vmul.f32 %v329, 1.442695
    %v332 = vpow.pop %v331
    %v333 = vmul.f32 %v330, 1.442695
    %v334 = vpow.pop %v333
    %v335 = vsel %vm314, %v332, 0.0
    %v336 = vrot.slane %v335, 4
    %v337 = vadd.f32 %v335, %v336
    %v338 = vrot.slane %v337, 2
    %v339 = vadd.f32 %v337, %v338
    %v340 = vrot.slane %v339, 1
    %v341 = vadd.f32 %v339, %v340
    %v342 = vsel %vm314, %v334, 0.0
    %v343 = vrot.slane %v342, 4
    %v344 = vadd.f32 %v342, %v343
    %v345 = vrot.slane %v344, 2
    %v346 = vadd.f32 %v344, %v345
    %v347 = vrot.slane %v346, 1
    %v348 = vadd.f32 %v346, %v347
    %v349 = vrcp.pop %v341
    %v350 = vrcp.pop %v348
    %v351 = vmul.f32 %v332, %v349
    %v352 = vmul.f32 %v334, %v350
    %v354 = vsel %vm314, %v351, 0
    %v357 = vsel %vm314, %v352, 0
    %vm359 = vcmask 1043456
    %v361 = vsel %vm359, %v165, 0
    %363 = vmatprep.subr.mxu0 0.0
    %364 = vmatpush1.msra.mxu0 %v361
    %365 = vmatprep.subr.mxu0 0.0
    %366 = vmatpush1.msra.mxu0 0.0
    %367 = vmatprep.subr.mxu0 0.0
    %368 = vmatpush1.msra.mxu0 0.0
    %369 = vmatprep.subr.mxu0 0.0
    %370 = vmatpush1.msra.mxu0 0.0
    %371 = vmatprep.subr.mxu0 0.0
    %372 = vmatpush1.msra.mxu0 0.0
    %373 = vmatprep.subr.mxu0 0.0
    %374 = vmatpush1.msra.mxu0 0.0
    %375 = vmatprep.subr.mxu0 0.0
    %376 = vmatpush1.msra.mxu0 0.0
    %377 = vmatprep.subr.mxu0 0.0
    %378 = vmatpush1.msra.mxu0 0.0
    %379 = vmatprep.subr.mxu0 0.0
    %380 = vmatpush1.msra.mxu0 0.0
    %381 = vmatprep.subr.mxu0 0.0
    %382 = vmatpush1.msra.mxu0 0.0
    %383 = vmatprep.subr.mxu0 0.0
    %384 = vmatpush1.msra.mxu0 0.0
    %385 = vmatprep.subr.mxu0 0.0
    %386 = vmatpush1.msra.mxu0 0.0
    %387 = vmatprep.subr.mxu0 0.0
    %388 = vmatpush1.msra.mxu0 0.0
    %389 = vmatprep.subr.mxu0 0.0
    %390 = vmatpush1.msra.mxu0 0.0
    %391 = vmatprep.subr.mxu0 0.0
    %392 = vmatpush1.msra.mxu0 0.0
    %393 = vmatprep.subr.mxu0 0.0
    %394 = vmatpush1.msra.mxu0 0.0
    %395 = vmatprep.subr.mxu0 0.0
    %396 = vmatpush1.msra.mxu0 0.0
    %397 = vmatprep.subr.mxu0 0.0
    %398 = vmatpush1.msra.mxu0 0.0
    %399 = vmatprep.subr.mxu0 0.0
    %400 = vmatpush1.msra.mxu0 0.0
    %401 = vmatprep.subr.mxu0 0.0
    %402 = vmatpush1.msra.mxu0 0.0
    %403 = vmatprep.subr.mxu0 0.0
    %404 = vmatpush1.msra.mxu0 0.0
    %405 = vmatprep.subr.mxu0 0.0
    %406 = vmatpush1.msra.mxu0 0.0
    %407 = vmatprep.subr.mxu0 0.0
    %408 = vmatpush1.msra.mxu0 0.0
    %409 = vmatprep.subr.mxu0 0.0
    %410 = vmatpush1.msra.mxu0 0.0
    %411 = vmatprep.subr.mxu0 0.0
    %412 = vmatpush1.msra.mxu0 0.0
    %413 = vmatprep.subr.mxu0 0.0
    %414 = vmatpush1.msra.mxu0 0.0
    %415 = vmatprep.subr.mxu0 0.0
    %416 = vmatpush1.msra.mxu0 0.0
    %417 = vmatprep.subr.mxu0 0.0
    %418 = vmatpush1.msra.mxu0 0.0
    %419 = vmatprep.subr.mxu0 0.0
    %420 = vmatpush1.msra.mxu0 0.0
    %421 = vmatprep.subr.mxu0 0.0
    %422 = vmatpush1.msra.mxu0 0.0
    %423 = vmatprep.subr.mxu0 0.0
    %424 = vmatpush1.msra.mxu0 0.0
    %425 = vmatprep.subr.mxu0 0.0
    %426 = vmatpush1.msra.mxu0 0.0
    %427 = vmatprep.mubr.f32.mxu0 0.0
    %428 = vmatmul.mubr.f32.gmra.mrb[0].mxu0 %v354
    %v429 = vpop.f32.mrb[0].mxu0
    %v430 = vadd.f32 0.0, %v429
    %v431 = vpop.f32.mrb[0].mxu0
    %432 = vmatprep.mubr.f32.mxu0 0.0
    %433 = vmatmul.mubr.f32.gmra.mrb[0].mxu0 %v357
    %v434 = vpop.f32.mrb[0].mxu0
    %v435 = vadd.f32 0.0, %v434
    %v436 = vpop.f32.mrb[0].mxu0
    %437 = vdwg.mxu0
    %438 = vrot.lane.b32.xlu0 %v127, 64
    %v439 = vpop.permute.xlu0 %438
    %440 = vrot.lane.b32.xlu0 %v130, 64
    %v441 = vpop.permute.xlu0 %440
    %v444 = vmul.f32 %v430, %v439
    %v445 = vmul.f32 %v435, %v441
    %v446 = vsel %vm88, %v444, 0.0
    %v447 = vrot.slane %v446, 4
    %v448 = vadd.f32 %v446, %v447
    %v449 = vrot.slane %v448, 2
    %v450 = vadd.f32 %v448, %v449
    %v451 = vrot.slane %v450, 1
    %v452 = vadd.f32 %v450, %v451
    %v453 = vsel %vm88, %v445, 0.0
    %v454 = vrot.slane %v453, 4
    %v455 = vadd.f32 %v453, %v454
    %v456 = vrot.slane %v455, 2
    %v457 = vadd.f32 %v455, %v456
    %v458 = vrot.slane %v457, 1
    %v459 = vadd.f32 %v457, %v458
    %v460 = vpack.c.bf16 %v452, %v452
    %v461 = vpack.c.bf16 %v459, %v459
    %v462 = vld [vmem:[%s3] sm:$0xf]
    %v463 = vld [vmem:[%s3 + $0x4] sm:$0xf]
    %v464 = vld [vmem:[%s3 + $0x8] sm:$0xf]
    %v465 = vld [vmem:[%s3 + $0xc] sm:$0xf]
    %v466 = vlaneseq
    %v467 = vshrl.u32 %v466, 7
    %v468 = vsub.s32 1, %v467
    %v469 = vrot.slane %v61, %v468
    %v472 = vunpack.c.l.b16 %v460
    %v473 = vunpack.c.l.b16 %v461
    %vm474 = vcmask 1041409
    %v475 = vsel %vm474, %v473, %v472
    %v476 = vpack.c.b16 %v475, %v475
    %v481 = vunpack.c.l.b16 %v462
    %v482 = vunpack.c.l.b16 %v463
    %v483 = vunpack.c.l.b16 %v464
    %v484 = vunpack.c.l.b16 %v465
    %v485 = vpack.c.b16 %v482, %v481
    %v486 = vpack.c.b16 %v484, %v483
    %v490 = vsel %vm88, %v476, 0
    %492 = vmatprep.subr.bf16.mxu0 0
    %493 = vmatpush1.bf16.msra.mxu0 %v485
    %494 = vmatprep.subr.bf16.mxu0 0
    %495 = vmatpush1.bf16.msra.mxu0 %v486
    %496 = vmatprep.subr.bf16.mxu0 0
    %497 = vmatpush1.bf16.msra.mxu0 0
    %498 = vmatprep.subr.bf16.mxu0 0
    %499 = vmatpush1.bf16.msra.mxu0 0
    %500 = vmatprep.subr.bf16.mxu0 0
    %501 = vmatpush1.bf16.msra.mxu0 0
    %502 = vmatprep.subr.bf16.mxu0 0
    %503 = vmatpush1.bf16.msra.mxu0 0
    %504 = vmatprep.subr.bf16.mxu0 0
    %505 = vmatpush1.bf16.msra.mxu0 0
    %506 = vmatprep.subr.bf16.mxu0 0
    %507 = vmatpush1.bf16.msra.mxu0 0
    %508 = vmatprep.subr.bf16.mxu0 0
    %509 = vmatpush1.bf16.msra.mxu0 0
    %510 = vmatprep.subr.bf16.mxu0 0
    %511 = vmatpush1.bf16.msra.mxu0 0
    %512 = vmatprep.subr.bf16.mxu0 0
    %513 = vmatpush1.bf16.msra.mxu0 0
    %514 = vmatprep.subr.bf16.mxu0 0
    %515 = vmatpush1.bf16.msra.mxu0 0
    %516 = vmatprep.subr.bf16.mxu0 0
    %517 = vmatpush1.bf16.msra.mxu0 0
    %518 = vmatprep.subr.bf16.mxu0 0
    %519 = vmatpush1.bf16.msra.mxu0 0
    %520 = vmatprep.subr.bf16.mxu0 0
    %521 = vmatpush1.bf16.msra.mxu0 0
    %522 = vmatprep.subr.bf16.mxu0 0
    %523 = vmatpush1.bf16.msra.mxu0 0
    %524 = vmatprep.mubr.bf16.mxu0 0
    %525 = vmatmul.mubr.bf16.gmra.mrb[0].mxu0 %v490
    %v526 = vpop.f32.mrb[0].mxu0
    %v527 = vadd.f32 %v469, %v526
    %v528 = vpop.f32.mrb[0].mxu0
    %v529 = vpop.f32.mrb[0].mxu0
    %v530 = vpop.f32.mrb[0].mxu0
    %531 = vdwg.mxu0
    %v534 = vrot.slane %v134, 7
    %v535 = vsel %vm474, %v534, %v133
    %v537 = vadd.f32 %v527, %v535
    %vm538 = vcmask 254976
    %v539 = vsel %vm538, %v537, 0.0
    %540 = vadd.xlane.f32.xlu0 %v539
    %v541 = vpop.xlane.xlu0 %540
    %v542 = vrcp.pop 32.0
    %v543 = vmul.f32 %v541, %v542
    %v544 = vmul.f32 %v537, %v537
    %v545 = vsel %vm538, %v544, 0.0
    %546 = vadd.xlane.f32.xlu0 %v545
    %v547 = vpop.xlane.xlu0 %546
    %v548 = vmul.f32 %v547, %v542
    %v549 = vmul.f32 %v543, %v543
    %v550 = vsub.f32 %v548, %v549
    %v551 = vmax.f32 %v550, 0.0
    %v552 = vsub.f32 %v537, %v543
    %v553 = vadd.f32 %v551, 1e-12
    %v554 = vrsqrt.pop %v553
    %v555 = vmul.f32 %v552, %v554
    %v556 = vlaneseq
    %v557 = vshrl.u32 %v556, 7
    %v558 = vsub.s32 2, %v557
    %v559 = vrot.slane %v61, %v558
    %v560 = vmul.f32 %v555, %v559
    %v561 = vlaneseq
    %v562 = vshrl.u32 %v561, 7
    %v563 = vsub.s32 3, %v562
    %v564 = vrot.slane %v61, %v563
    %v565 = vadd.f32 %v560, %v564
    %v566 = vpack.c.bf16 %v565, %v565
    %v567 = vld [vmem:[%s4] sm:$0xf]
    %v568 = vld [vmem:[%s4 + $0x4] sm:$0xf]
    %v569 = vld [vmem:[%s4 + $0x8] sm:$0xf]
    %v570 = vld [vmem:[%s4 + $0xc] sm:$0xf]
    %v571 = vlaneseq
    %v572 = vshrl.u32 %v571, 7
    %v573 = vsub.s32 4, %v572
    %v574 = vrot.slane %v61, %v573
    %v579 = vunpack.c.l.b16 %v567
    %v580 = vunpack.c.l.b16 %v568
    %v581 = vunpack.c.l.b16 %v569
    %v582 = vunpack.c.l.b16 %v570
    %v583 = vpack.c.b16 %v580, %v579
    %v584 = vpack.c.b16 %v582, %v581
    %v588 = vsel %vm88, %v566, 0
    %590 = vmatprep.subr.bf16.mxu0 0
    %591 = vmatpush1.bf16.msra.mxu0 %v583
    %592 = vmatprep.subr.bf16.mxu0 0
    %593 = vmatpush1.bf16.msra.mxu0 %v584
    %594 = vmatprep.subr.bf16.mxu0 0
    %595 = vmatpush1.bf16.msra.mxu0 0
    %596 = vmatprep.subr.bf16.mxu0 0
    %597 = vmatpush1.bf16.msra.mxu0 0
    %598 = vmatprep.subr.bf16.mxu0 0
    %599 = vmatpush1.bf16.msra.mxu0 0
    %600 = vmatprep.subr.bf16.mxu0 0
    %601 = vmatpush1.bf16.msra.mxu0 0
    %602 = vmatprep.subr.bf16.mxu0 0
    %603 = vmatpush1.bf16.msra.mxu0 0
    %604 = vmatprep.subr.bf16.mxu0 0
    %605 = vmatpush1.bf16.msra.mxu0 0
    %606 = vmatprep.subr.bf16.mxu0 0
    %607 = vmatpush1.bf16.msra.mxu0 0
    %608 = vmatprep.subr.bf16.mxu0 0
    %609 = vmatpush1.bf16.msra.mxu0 0
    %610 = vmatprep.subr.bf16.mxu0 0
    %611 = vmatpush1.bf16.msra.mxu0 0
    %612 = vmatprep.subr.bf16.mxu0 0
    %613 = vmatpush1.bf16.msra.mxu0 0
    %614 = vmatprep.subr.bf16.mxu0 0
    %615 = vmatpush1.bf16.msra.mxu0 0
    %616 = vmatprep.subr.bf16.mxu0 0
    %617 = vmatpush1.bf16.msra.mxu0 0
    %618 = vmatprep.subr.bf16.mxu0 0
    %619 = vmatpush1.bf16.msra.mxu0 0
    %620 = vmatprep.subr.bf16.mxu0 0
    %621 = vmatpush1.bf16.msra.mxu0 0
    %622 = vmatprep.mubr.bf16.mxu0 0
    %623 = vmatmul.mubr.bf16.gmra.mrb[0].mxu0 %v588
    %v624 = vpop.f32.mrb[0].mxu0
    %v625 = vadd.f32 %v574, %v624
    %v626 = vpop.f32.mrb[0].mxu0
    %v627 = vpop.f32.mrb[0].mxu0
    %v628 = vpop.f32.mrb[0].mxu0
    %629 = vdwg.mxu0
    %v630 = vmul.f32 %v625, 0.5
    %v631 = vmul.f32 %v625, 0.70710677
    %v632 = verf.f32.pop %v631
    %v633 = vadd.f32 %v632, 1.0
    %v634 = vmul.f32 %v630, %v633
    %v635 = vpack.c.bf16 %v634, %v634
    %v636 = vld [vmem:[%s5] sm:$0xf]
    %v637 = vld [vmem:[%s5 + $0x4] sm:$0xf]
    %v638 = vld [vmem:[%s5 + $0x8] sm:$0xf]
    %v639 = vld [vmem:[%s5 + $0xc] sm:$0xf]
    %v640 = vld [vmem:[%s5 + $0x10] sm:$0xf]
    %v641 = vld [vmem:[%s5 + $0x14] sm:$0xf]
    %v642 = vld [vmem:[%s5 + $0x18] sm:$0xf]
    %v643 = vld [vmem:[%s5 + $0x1c] sm:$0xf]
    %v644 = vlaneseq
    %v645 = vshrl.u32 %v644, 7
    %v646 = vsub.s32 5, %v645
    %v647 = vrot.slane %v61, %v646
    %v656 = vunpack.c.l.b16 %v636
    %v657 = vunpack.c.l.b16 %v637
    %v658 = vunpack.c.l.b16 %v638
    %v659 = vunpack.c.l.b16 %v639
    %v660 = vunpack.c.l.b16 %v640
    %v661 = vunpack.c.l.b16 %v641
    %v662 = vunpack.c.l.b16 %v642
    %v663 = vunpack.c.l.b16 %v643
    %v664 = vpack.c.b16 %v657, %v656
    %v665 = vpack.c.b16 %v659, %v658
    %v666 = vpack.c.b16 %v661, %v660
    %v667 = vpack.c.b16 %v663, %v662
    %vm672 = vcmask 523264
    %v674 = vsel %vm672, %v635, 0
    %676 = vmatprep.subr.bf16.mxu0 0
    %677 = vmatpush1.bf16.msra.mxu0 %v664
    %678 = vmatprep.subr.bf16.mxu0 0
    %679 = vmatpush1.bf16.msra.mxu0 %v665
    %680 = vmatprep.subr.bf16.mxu0 0
    %681 = vmatpush1.bf16.msra.mxu0 %v666
    %682 = vmatprep.subr.bf16.mxu0 0
    %683 = vmatpush1.bf16.msra.mxu0 %v667
    %684 = vmatprep.subr.bf16.mxu0 0
    %685 = vmatpush1.bf16.msra.mxu0 0
    %686 = vmatprep.subr.bf16.mxu0 0
    %687 = vmatpush1.bf16.msra.mxu0 0
    %688 = vmatprep.subr.bf16.mxu0 0
    %689 = vmatpush1.bf16.msra.mxu0 0
    %690 = vmatprep.subr.bf16.mxu0 0
    %691 = vmatpush1.bf16.msra.mxu0 0
    %692 = vmatprep.subr.bf16.mxu0 0
    %693 = vmatpush1.bf16.msra.mxu0 0
    %694 = vmatprep.subr.bf16.mxu0 0
    %695 = vmatpush1.bf16.msra.mxu0 0
    %696 = vmatprep.subr.bf16.mxu0 0
    %697 = vmatpush1.bf16.msra.mxu0 0
    %698 = vmatprep.subr.bf16.mxu0 0
    %699 = vmatpush1.bf16.msra.mxu0 0
    %700 = vmatprep.subr.bf16.mxu0 0
    %701 = vmatpush1.bf16.msra.mxu0 0
    %702 = vmatprep.subr.bf16.mxu0 0
    %703 = vmatpush1.bf16.msra.mxu0 0
    %704 = vmatprep.subr.bf16.mxu0 0
    %705 = vmatpush1.bf16.msra.mxu0 0
    %706 = vmatprep.subr.bf16.mxu0 0
    %707 = vmatpush1.bf16.msra.mxu0 0
    %708 = vmatprep.mubr.bf16.mxu0 0
    %709 = vmatmul.mubr.bf16.gmra.mrb[0].mxu0 %v674
    %v710 = vpop.f32.mrb[0].mxu0
    %v711 = vadd.f32 %v647, %v710
    %v712 = vpop.f32.mrb[0].mxu0
    %v713 = vpop.f32.mrb[0].mxu0
    %v714 = vpop.f32.mrb[0].mxu0
    %715 = vdwg.mxu0
    %v716 = vadd.f32 %v711, %v565
    %v717 = vsel %vm538, %v716, 0.0
    %718 = vadd.xlane.f32.xlu0 %v717
    %v719 = vpop.xlane.xlu0 %718
    %v720 = vmul.f32 %v719, %v542
    %v721 = vmul.f32 %v716, %v716
    %v722 = vsel %vm538, %v721, 0.0
    %723 = vadd.xlane.f32.xlu0 %v722
    %v724 = vpop.xlane.xlu0 %723
    %v725 = vmul.f32 %v724, %v542
    %v726 = vmul.f32 %v720, %v720
    %v727 = vsub.f32 %v725, %v726
    %v728 = vmax.f32 %v727, 0.0
    %v729 = vsub.f32 %v716, %v720
    %v730 = vadd.f32 %v728, 1e-12
    %v731 = vrsqrt.pop %v730
    %v732 = vmul.f32 %v729, %v731
    %v733 = vlaneseq
    %v734 = vshrl.u32 %v733, 7
    %v735 = vsub.s32 6, %v734
    %v736 = vrot.slane %v61, %v735
    %v737 = vmul.f32 %v732, %v736
    %v738 = vlaneseq
    %v739 = vshrl.u32 %v738, 7
    %v740 = vsub.s32 7, %v739
    %v741 = vrot.slane %v61, %v740
    %v742 = vadd.f32 %v737, %v741
    %v743 = vpack.c.bf16 %v742, %v742
    %v744 = vld [vmem:[%s6] sm:$0xf]
    %v745 = vld [vmem:[%s6 + $0x4] sm:$0xf]
    %v746 = vld [vmem:[%s6 + $0x8] sm:$0xf]
    %v747 = vld [vmem:[%s6 + $0xc] sm:$0xf]
    %v748 = vlaneseq
    %v749 = vshrl.u32 %v748, 7
    %v750 = vsub.s32 0, %v749
    %v751 = vrot.slane %v62, %v750
    %v756 = vunpack.c.l.b16 %v744
    %v757 = vunpack.c.l.b16 %v745
    %v758 = vunpack.c.l.b16 %v746
    %v759 = vunpack.c.l.b16 %v747
    %v760 = vpack.c.b16 %v757, %v756
    %v761 = vpack.c.b16 %v759, %v758
    %v765 = vsel %vm88, %v743, 0
    %767 = vmatprep.subr.bf16.mxu0 0
    %768 = vmatpush1.bf16.msra.mxu0 %v760
    %769 = vmatprep.subr.bf16.mxu0 0
    %770 = vmatpush1.bf16.msra.mxu0 %v761
    %771 = vmatprep.subr.bf16.mxu0 0
    %772 = vmatpush1.bf16.msra.mxu0 0
    %773 = vmatprep.subr.bf16.mxu0 0
    %774 = vmatpush1.bf16.msra.mxu0 0
    %775 = vmatprep.subr.bf16.mxu0 0
    %776 = vmatpush1.bf16.msra.mxu0 0
    %777 = vmatprep.subr.bf16.mxu0 0
    %778 = vmatpush1.bf16.msra.mxu0 0
    %779 = vmatprep.subr.bf16.mxu0 0
    %780 = vmatpush1.bf16.msra.mxu0 0
    %781 = vmatprep.subr.bf16.mxu0 0
    %782 = vmatpush1.bf16.msra.mxu0 0
    %783 = vmatprep.subr.bf16.mxu0 0
    %784 = vmatpush1.bf16.msra.mxu0 0
    %785 = vmatprep.subr.bf16.mxu0 0
    %786 = vmatpush1.bf16.msra.mxu0 0
    %787 = vmatprep.subr.bf16.mxu0 0
    %788 = vmatpush1.bf16.msra.mxu0 0
    %789 = vmatprep.subr.bf16.mxu0 0
    %790 = vmatpush1.bf16.msra.mxu0 0
    %791 = vmatprep.subr.bf16.mxu0 0
    %792 = vmatpush1.bf16.msra.mxu0 0
    %793 = vmatprep.subr.bf16.mxu0 0
    %794 = vmatpush1.bf16.msra.mxu0 0
    %795 = vmatprep.subr.bf16.mxu0 0
    %796 = vmatpush1.bf16.msra.mxu0 0
    %797 = vmatprep.subr.bf16.mxu0 0
    %798 = vmatpush1.bf16.msra.mxu0 0
    %799 = vmatprep.mubr.bf16.mxu0 0
    %800 = vmatmul.mubr.bf16.gmra.mrb[0].mxu0 %v765
    %v801 = vpop.f32.mrb[0].mxu0
    %v802 = vadd.f32 %v751, %v801
    %v803 = vpop.f32.mrb[0].mxu0
    %v804 = vpop.f32.mrb[0].mxu0
    %v805 = vpop.f32.mrb[0].mxu0
    %806 = vdwg.mxu0
    %v807 = vtanh.pop %v802
    %809 = vset.pattern.permute.xlu0 0
    %810 = vperm.xlu0 %809, %v62
    %v811 = vpop.permute.xlu0 %810
    %v812 = vrot.slane %v62, 1
    %v813 = vrot.slane %v811, 2
    %v815 = vsel %vm88, %v812, 0
    %v818 = vsel %vm88, %v807, 0
    %820 = vmatprep.subr.mxu0 0.0
    %821 = vmatpush1.xpose.msra.mxu0 %v818
    %822 = vmatprep.subr.mxu0 0.0
    %823 = vmatpush1.xpose.msra.mxu0 0.0
    %824 = vmatprep.subr.mxu0 0.0
    %825 = vmatpush1.xpose.msra.mxu0 0.0
    %826 = vmatprep.subr.mxu0 0.0
    %827 = vmatpush1.xpose.msra.mxu0 0.0
    %828 = vmatprep.subr.mxu0 0.0
    %829 = vmatpush1.xpose.msra.mxu0 0.0
    %830 = vmatprep.subr.mxu0 0.0
    %831 = vmatpush1.xpose.msra.mxu0 0.0
    %832 = vmatprep.subr.mxu0 0.0
    %833 = vmatpush1.xpose.msra.mxu0 0.0
    %834 = vmatprep.subr.mxu0 0.0
    %835 = vmatpush1.xpose.msra.mxu0 0.0
    %836 = vmatprep.subr.mxu0 0.0
    %837 = vmatpush1.xpose.msra.mxu0 0.0
    %838 = vmatprep.subr.mxu0 0.0
    %839 = vmatpush1.xpose.msra.mxu0 0.0
    %840 = vmatprep.subr.mxu0 0.0
    %841 = vmatpush1.xpose.msra.mxu0 0.0
    %842 = vmatprep.subr.mxu0 0.0
    %843 = vmatpush1.xpose.msra.mxu0 0.0
    %844 = vmatprep.subr.mxu0 0.0
    %845 = vmatpush1.xpose.msra.mxu0 0.0
    %846 = vmatprep.subr.mxu0 0.0
    %847 = vmatpush1.xpose.msra.mxu0 0.0
    %848 = vmatprep.subr.mxu0 0.0
    %849 = vmatpush1.xpose.msra.mxu0 0.0
    %850 = vmatprep.subr.mxu0 0.0
    %851 = vmatpush1.xpose.msra.mxu0 0.0
    %852 = vmatprep.subr.mxu0 0.0
    %853 = vmatpush1.xpose.msra.mxu0 0.0
    %854 = vmatprep.subr.mxu0 0.0
    %855 = vmatpush1.xpose.msra.mxu0 0.0
    %856 = vmatprep.subr.mxu0 0.0
    %857 = vmatpush1.xpose.msra.mxu0 0.0
    %858 = vmatprep.subr.mxu0 0.0
    %859 = vmatpush1.xpose.msra.mxu0 0.0
    %860 = vmatprep.subr.mxu0 0.0
    %861 = vmatpush1.xpose.msra.mxu0 0.0
    %862 = vmatprep.subr.mxu0 0.0
    %863 = vmatpush1.xpose.msra.mxu0 0.0
    %864 = vmatprep.subr.mxu0 0.0
    %865 = vmatpush1.xpose.msra.mxu0 0.0
    %866 = vmatprep.subr.mxu0 0.0
    %867 = vmatpush1.xpose.msra.mxu0 0.0
    %868 = vmatprep.subr.mxu0 0.0
    %869 = vmatpush1.xpose.msra.mxu0 0.0
    %870 = vmatprep.subr.mxu0 0.0
    %871 = vmatpush1.xpose.msra.mxu0 0.0
    %872 = vmatprep.subr.mxu0 0.0
    %873 = vmatpush1.xpose.msra.mxu0 0.0
    %874 = vmatprep.subr.mxu0 0.0
    %875 = vmatpush1.xpose.msra.mxu0 0.0
    %876 = vmatprep.subr.mxu0 0.0
    %877 = vmatpush1.xpose.msra.mxu0 0.0
    %878 = vmatprep.subr.mxu0 0.0
    %879 = vmatpush1.xpose.msra.mxu0 0.0
    %880 = vmatprep.subr.mxu0 0.0
    %881 = vmatpush1.xpose.msra.mxu0 0.0
    %882 = vmatprep.subr.mxu0 0.0
    %883 = vmatpush1.xpose.msra.mxu0 0.0
    %884 = vmatprep.mubr.f32.mxu0 0.0
    %885 = vmatmul.mubr.f32.gmra.mrb[0].mxu0 %v815
    %v886 = vpop.f32.mrb[0].mxu0
    %v887 = vadd.f32 %v813, %v886
    %v888 = vpop.f32.mrb[0].mxu0
    %889 = vdwg.mxu0
    %vm890 = vcmask 8192
    %891 = vst.msk [vmem:[#allocation7] sm:$0x1] %vm890, %v887
    // Predicated region
    $region42: #{tpu_custom_call.1} parent=1 // pred_check
      _
    $region43: #{tpu_custom_call.1} parent=1 // pred_check_branch
      %893 = sbr.rel (0) target = $region45
    $region44: #{tpu_custom_call.1} parent=1 // pred_region
      %s895 = ssub.s32 16, 16
      %896 = vsyncadd [#allocation4], %s895
      %s898 = sshll.u32 [#allocation7], 4
      %s899 = int_to_ptr.vmem [resolvable:$true] %s898
      %901 = dma.vmem_to_hbm [thread:$0]  %s899, 16, %s8, [#allocation4]
    $region45: #{tpu_custom_call.1} parent=1 // pred_fallthru
      _
    // Predicated region
    $region46: #{tpu_custom_call.1} parent=1 // pred_check
      _
    $region47: #{tpu_custom_call.1} parent=1 // pred_check_branch
      %903 = sbr.rel (0) target = $region49
    $region48: #{tpu_custom_call.1} parent=1 // pred_region
      %904 = dma.done [#allocation4], 16
    $region49: #{tpu_custom_call.1} parent=1 // pred_fallthru
      _
    %905 = vsyncpa [#allocation3], 1
    %906 = vsyncpa [#allocation6], 1
    %907 = vsyncpa [#allocation4], 1

</llo_original>
